<compile_context>
chip_gen: v7x
topology: tpu7x:2x2x1
jax: 0.10.0
libtpu: 0.0.40
codegen_flags: <defaults>
</compile_context>

<pallas_src>
import jax
import jax.numpy as jnp
from jax.experimental import pallas as pl
from jax.experimental.pallas import tpu as pltpu

LANE = 128


def rnn_kernel(tok_ref,      # SMEM (T, B) int32   (scalar prefetch)
               rec_ref,      # VMEM (V + H, H): rows [0:V] = W_ih^T + b, rows [V:] = W_hh^T
               outw_ref,     # VMEM (H + 1, VOp): rows [0:H] = W_out^T (padded), row [H] = b_out
               h0_ref,       # VMEM (B, H)
               y_ref,        # VMEM (T*B, VOp)  lane-dense logits (time-major rows)
               hN_ref,       # VMEM (B, H)      final hidden state (aliased to h0 buffer)
               xw_ref,       # VMEM scratch (T*B, H)  gathered (bias-folded) input rows
               hs_ref):      # VMEM scratch (T*B, H)  all hidden states
    T, B = tok_ref.shape
    H = h0_ref.shape[1]
    V = rec_ref.shape[0] - H

    # ---- Input projection hoisted off the recurrent chain:
    # one_hot(x) @ W_ih^T + b  ==  row gather of (W_ih^T + b) by token id (exact).
    for t in range(T):
        for b in range(B):
            xw_ref[pl.ds(t * B + b, 1), :] = rec_ref[pl.ds(tok_ref[t, b], 1), :]

    whh = rec_ref[pl.ds(V, H), :]            # (H, H), loaded once (row V is 8-aligned)

    # ---- Recurrence: per-step critical path is dot + add + tanh only.
    h = h0_ref[...]
    for t in range(T):                       # static, fully unrolled time loop
        xw = xw_ref[pl.ds(t * B, B), :]
        h = jnp.tanh(xw + jnp.dot(h, whh, preferred_element_type=jnp.float32))
        hs_ref[pl.ds(t * B, B), :] = h       # plain store; next step depends only on h

    hN_ref[...] = h                          # final state written exactly once

    # ---- Single batched, lane-dense output projection: (T*B, H) @ (H, VOp) + b.
    wout = outw_ref[pl.ds(0, H), :]
    bout = outw_ref[pl.ds(H, 1), :]
    y_ref[...] = (
        jnp.dot(hs_ref[...], wout, preferred_element_type=jnp.float32) + bout
    )


def prepare_params(w_ih_t, w_hh_t, b_ih, b_hh, w_out_t, b_out):
    """One-time parameter prep: fold biases, coalesce into two kernel slabs."""
    V, H = w_ih_t.shape
    VO = w_out_t.shape[1]
    VO_pad = ((VO + LANE - 1) // LANE) * LANE

    # Fold the combined RNN bias into every row of W_ih^T: a gathered row then
    # already carries the bias -> nothing to add on the recurrent chain.
    w_ih_b = w_ih_t + (b_ih + b_hh)                          # (V, H)
    rec_slab = jnp.concatenate([w_ih_b, w_hh_t], axis=0)     # (V + H, H)

    # Output projection slab, zero-padded to a lane-dense 128-multiple width.
    out_slab = jnp.zeros((H + 1, VO_pad), jnp.float32)
    out_slab = out_slab.at[:H, :VO].set(w_out_t)
    out_slab = out_slab.at[H, :VO].set(b_out.reshape(-1))
    return rec_slab, out_slab, VO


def rnn_model_forward(tokens, h0, rec_slab, out_slab, vocab_out):
    """tokens: (B, T) int32; h0: (1, B, H) float32.
    Returns (output (T*B, vocab_out), state (1, B, H))."""
    B, T = tokens.shape
    VH, H = rec_slab.shape
    V = VH - H
    VO_pad = out_slab.shape[1]

    # Clamp ids: VMEM refs have no runtime OOB check, an id >= V would silently
    # read adjacent memory.
    tok_tm = jnp.clip(tokens.T.astype(jnp.int32), 0, V - 1)   # (T, B) time-major
    h0_2d = h0.reshape(B, H)

    y_pad, h_final = pl.pallas_call(
        rnn_kernel,
        out_shape=(
            jax.ShapeDtypeStruct((T * B, VO_pad), jnp.float32),
            jax.ShapeDtypeStruct((B, H), jnp.float32),
        ),
        grid_spec=pltpu.PrefetchScalarGridSpec(
            num_scalar_prefetch=1,            # tokens -> SMEM
            grid=(1,),                        # single invocation; time loop in-kernel
            in_specs=[
                pl.BlockSpec((VH, H), lambda i, tok: (0, 0)),        # recurrence slab
                pl.BlockSpec((H + 1, VO_pad), lambda i, tok: (0, 0)),# output-proj slab
                pl.BlockSpec((B, H), lambda i, tok: (0, 0)),         # h0
            ],
            out_specs=[
                pl.BlockSpec((T * B, VO_pad), lambda i, tok: (0, 0)),# logits slab
                pl.BlockSpec((B, H), lambda i, tok: (0, 0)),         # final hidden
            ],
            scratch_shapes=[
                pltpu.VMEM((T * B, H), jnp.float32),   # gathered input rows
                pltpu.VMEM((T * B, H), jnp.float32),   # hidden-state slab
            ],
        ),
        # Inputs: 0=tokens (scalar prefetch), 1=rec_slab, 2=out_slab, 3=h0_2d.
        input_output_aliases={3: 1},           # reuse h0 buffer for final state
        compiler_params=pltpu.CompilerParams(
            dimension_semantics=("arbitrary",)),
    )(tok_tm, rec_slab, out_slab, h0_2d)

    output = y_pad[:, :vocab_out]              # drop lane padding
    state = h_final.reshape(1, B, H)           # (num_dirs*num_layers, B, H)
    return output, state


def _reference_forward(tokens, h0, params):
    """Pure-JAX reference mirroring the PyTorch module semantics."""
    w_ih, w_hh, b_comb, w_out, b_out = params
    B, T = tokens.shape
    V, H = w_ih.shape
    x = jax.nn.one_hot(tokens.T.astype(jnp.int32), V, dtype=jnp.float32)  # (T,B,V)
    h = h0.reshape(B, H)
    ys = []
    for t in range(T):
        h = jnp.tanh(x[t] @ w_ih + h @ w_hh + b_comb)
        ys.append(h)
    Y = jnp.stack(ys, axis=0)                       # (T,B,H)
    out = Y.reshape(-1, H) @ w_out + b_out          # (T*B, vocab)
    return out, h.reshape(1, B, H)


if __name__ == "__main__":
    # Small shapes consistent with the module: vocab=32, hidden=32, batch=2, seq=8.
    VOCAB, HIDDEN, BATCH, SEQ = 32, 32, 2, 8

    key = jax.random.PRNGKey(0)
    k_ih, k_hh, k_bi, k_bh, k_wl, k_bl, k_tok = jax.random.split(key, 7)
    bound = 1.0 / (HIDDEN ** 0.5)

    # Parameters stored already-transposed for the kernel (x @ W_ih^T form).
    w_ih = jax.random.uniform(k_ih, (VOCAB, HIDDEN), jnp.float32, -bound, bound)   # W_ih^T
    w_hh = jax.random.uniform(k_hh, (HIDDEN, HIDDEN), jnp.float32, -bound, bound)  # W_hh^T
    b_ih = jax.random.uniform(k_bi, (1, HIDDEN), jnp.float32, -bound, bound)
    b_hh = jax.random.uniform(k_bh, (1, HIDDEN), jnp.float32, -bound, bound)
    w_out = jax.random.uniform(k_wl, (HIDDEN, VOCAB), jnp.float32, -bound, bound)  # W_linear^T
    b_out = jax.random.uniform(k_bl, (1, VOCAB), jnp.float32, -bound, bound)

    rec_slab, out_slab, vo = prepare_params(w_ih, w_hh, b_ih, b_hh, w_out, b_out)

    tokens = jax.random.randint(k_tok, (BATCH, SEQ), 0, VOCAB, dtype=jnp.int32)
    h0 = jnp.zeros((1, BATCH, HIDDEN), jnp.float32)   # begin_state

    fwd = jax.jit(rnn_model_forward, static_argnums=(4,))
    out, state = fwd(tokens, h0, rec_slab, out_slab, vo)
    out = jax.block_until_ready(out)
    state = jax.block_until_ready(state)

    # Sanity check against pure-JAX reference.
    ref_out, ref_state = _reference_forward(tokens, h0,
                                            (w_ih, w_hh, b_ih + b_hh, w_out, b_out))
    assert out.shape == (SEQ * BATCH, VOCAB)
    assert state.shape == (1, BATCH, HIDDEN)
    assert jnp.allclose(out, ref_out, atol=1e-5, rtol=1e-5)
    assert jnp.allclose(state, ref_state, atol=1e-5, rtol=1e-5)

    # TODO(synk): only the single-layer, unidirectional, tanh nn.RNN variant of
    # rnn_layer is implemented (no LSTM / GRU / bidirectional / multi-layer
    # branches); at large vocab/hidden sizes W_ih should stay in HBM (pl.ANY)
    # with per-token row DMA and the output projection tiled over a parallel
    # grid axis (v7x 64 MiB VMEM / dual-TC).
    print("KERNEL_OK")
</pallas_src>

<mosaic_0001>
module attributes {stable_mosaic.version = 11 : i64} {
  func.func @rnn_kernel(%arg0: i32, %arg1: memref<8x2xi32, #tpu.memory_space<smem>>, %arg2: memref<64x32xf32, #tpu.memory_space<vmem>>, %arg3: memref<33x128xf32, #tpu.memory_space<vmem>>, %arg4: memref<2x32xf32, #tpu.memory_space<vmem>>, %arg5: memref<16x128xf32, #tpu.memory_space<vmem>>, %arg6: memref<2x32xf32, #tpu.memory_space<vmem>>, %arg7: memref<16x32xf32, #tpu.memory_space<vmem>>, %arg8: memref<16x32xf32, #tpu.memory_space<vmem>>) attributes {dimension_semantics = [#tpu.dimension_semantics<arbitrary>], iteration_bounds = array<i64: 1>, scalar_prefetch = 1 : i64, scratch_operands = 2 : i64, tpu.core_type = #tpu.core_type<tc>, window_params = [{pipeline_mode = #tpu.pipeline_mode<synchronous>, transform_indices = @transform_0, window_bounds = array<i64: 64, 32>}, {pipeline_mode = #tpu.pipeline_mode<synchronous>, transform_indices = @transform_1, window_bounds = array<i64: 33, 128>}, {pipeline_mode = #tpu.pipeline_mode<synchronous>, transform_indices = @transform_2, window_bounds = array<i64: 2, 32>}, {pipeline_mode = #tpu.pipeline_mode<synchronous>, transform_indices = @transform_3, window_bounds = array<i64: 16, 128>}, {pipeline_mode = #tpu.pipeline_mode<synchronous>, transform_indices = @transform_4, window_bounds = array<i64: 2, 32>}]} {
    %c0 = arith.constant 0 : index
    %c0_0 = arith.constant 0 : index
    %0 = memref.load %arg1[%c0, %c0_0] : memref<8x2xi32, #tpu.memory_space<smem>>
    %1 = arith.index_cast %0 : i32 to index
    %c0_1 = arith.constant 0 : index
    %2 = vector.load %arg2[%1, %c0_1] : memref<64x32xf32, #tpu.memory_space<vmem>>, vector<1x32xf32>
    %c0_2 = arith.constant 0 : index
    %c0_3 = arith.constant 0 : index
    %3 = vector.load %arg7[%c0_2, %c0_3] : memref<16x32xf32, #tpu.memory_space<vmem>>, vector<1x32xf32>
    tpu.vector_store %arg7[%c0_2, %c0_3], %2 {strides = array<i32>} : memref<16x32xf32, #tpu.memory_space<vmem>>, vector<1x32xf32>,
    %c0_4 = arith.constant 0 : index
    %c1 = arith.constant 1 : index
    %4 = memref.load %arg1[%c0_4, %c1] : memref<8x2xi32, #tpu.memory_space<smem>>
    %5 = arith.index_cast %4 : i32 to index
    %c0_5 = arith.constant 0 : index
    %6 = vector.load %arg2[%5, %c0_5] : memref<64x32xf32, #tpu.memory_space<vmem>>, vector<1x32xf32>
    %c1_6 = arith.constant 1 : index
    %c0_7 = arith.constant 0 : index
    %7 = vector.load %arg7[%c1_6, %c0_7] : memref<16x32xf32, #tpu.memory_space<vmem>>, vector<1x32xf32>
    tpu.vector_store %arg7[%c1_6, %c0_7], %6 {strides = array<i32>} : memref<16x32xf32, #tpu.memory_space<vmem>>, vector<1x32xf32>,
    %c1_8 = arith.constant 1 : index
    %c0_9 = arith.constant 0 : index
    %8 = memref.load %arg1[%c1_8, %c0_9] : memref<8x2xi32, #tpu.memory_space<smem>>
    %9 = arith.index_cast %8 : i32 to index
    %c0_10 = arith.constant 0 : index
    %10 = vector.load %arg2[%9, %c0_10] : memref<64x32xf32, #tpu.memory_space<vmem>>, vector<1x32xf32>
    %c2 = arith.constant 2 : index
    %c0_11 = arith.constant 0 : index
    %11 = vector.load %arg7[%c2, %c0_11] : memref<16x32xf32, #tpu.memory_space<vmem>>, vector<1x32xf32>
    tpu.vector_store %arg7[%c2, %c0_11], %10 {strides = array<i32>} : memref<16x32xf32, #tpu.memory_space<vmem>>, vector<1x32xf32>,
    %c1_12 = arith.constant 1 : index
    %c1_13 = arith.constant 1 : index
    %12 = memref.load %arg1[%c1_12, %c1_13] : memref<8x2xi32, #tpu.memory_space<smem>>
    %13 = arith.index_cast %12 : i32 to index
    %c0_14 = arith.constant 0 : index
    %14 = vector.load %arg2[%13, %c0_14] : memref<64x32xf32, #tpu.memory_space<vmem>>, vector<1x32xf32>
    %c3 = arith.constant 3 : index
    %c0_15 = arith.constant 0 : index
    %15 = vector.load %arg7[%c3, %c0_15] : memref<16x32xf32, #tpu.memory_space<vmem>>, vector<1x32xf32>
    tpu.vector_store %arg7[%c3, %c0_15], %14 {strides = array<i32>} : memref<16x32xf32, #tpu.memory_space<vmem>>, vector<1x32xf32>,
    %c2_16 = arith.constant 2 : index
    %c0_17 = arith.constant 0 : index
    %16 = memref.load %arg1[%c2_16, %c0_17] : memref<8x2xi32, #tpu.memory_space<smem>>
    %17 = arith.index_cast %16 : i32 to index
    %c0_18 = arith.constant 0 : index
    %18 = vector.load %arg2[%17, %c0_18] : memref<64x32xf32, #tpu.memory_space<vmem>>, vector<1x32xf32>
    %c4 = arith.constant 4 : index
    %c0_19 = arith.constant 0 : index
    %19 = vector.load %arg7[%c4, %c0_19] : memref<16x32xf32, #tpu.memory_space<vmem>>, vector<1x32xf32>
    tpu.vector_store %arg7[%c4, %c0_19], %18 {strides = array<i32>} : memref<16x32xf32, #tpu.memory_space<vmem>>, vector<1x32xf32>,
    %c2_20 = arith.constant 2 : index
    %c1_21 = arith.constant 1 : index
    %20 = memref.load %arg1[%c2_20, %c1_21] : memref<8x2xi32, #tpu.memory_space<smem>>
    %21 = arith.index_cast %20 : i32 to index
    %c0_22 = arith.constant 0 : index
    %22 = vector.load %arg2[%21, %c0_22] : memref<64x32xf32, #tpu.memory_space<vmem>>, vector<1x32xf32>
    %c5 = arith.constant 5 : index
    %c0_23 = arith.constant 0 : index
    %23 = vector.load %arg7[%c5, %c0_23] : memref<16x32xf32, #tpu.memory_space<vmem>>, vector<1x32xf32>
    tpu.vector_store %arg7[%c5, %c0_23], %22 {strides = array<i32>} : memref<16x32xf32, #tpu.memory_space<vmem>>, vector<1x32xf32>,
    %c3_24 = arith.constant 3 : index
    %c0_25 = arith.constant 0 : index
    %24 = memref.load %arg1[%c3_24, %c0_25] : memref<8x2xi32, #tpu.memory_space<smem>>
    %25 = arith.index_cast %24 : i32 to index
    %c0_26 = arith.constant 0 : index
    %26 = vector.load %arg2[%25, %c0_26] : memref<64x32xf32, #tpu.memory_space<vmem>>, vector<1x32xf32>
    %c6 = arith.constant 6 : index
    %c0_27 = arith.constant 0 : index
    %27 = vector.load %arg7[%c6, %c0_27] : memref<16x32xf32, #tpu.memory_space<vmem>>, vector<1x32xf32>
    tpu.vector_store %arg7[%c6, %c0_27], %26 {strides = array<i32>} : memref<16x32xf32, #tpu.memory_space<vmem>>, vector<1x32xf32>,
    %c3_28 = arith.constant 3 : index
    %c1_29 = arith.constant 1 : index
    %28 = memref.load %arg1[%c3_28, %c1_29] : memref<8x2xi32, #tpu.memory_space<smem>>
    %29 = arith.index_cast %28 : i32 to index
    %c0_30 = arith.constant 0 : index
    %30 = vector.load %arg2[%29, %c0_30] : memref<64x32xf32, #tpu.memory_space<vmem>>, vector<1x32xf32>
    %c7 = arith.constant 7 : index
    %c0_31 = arith.constant 0 : index
    %31 = vector.load %arg7[%c7, %c0_31] : memref<16x32xf32, #tpu.memory_space<vmem>>, vector<1x32xf32>
    tpu.vector_store %arg7[%c7, %c0_31], %30 {strides = array<i32>} : memref<16x32xf32, #tpu.memory_space<vmem>>, vector<1x32xf32>,
    %c4_32 = arith.constant 4 : index
    %c0_33 = arith.constant 0 : index
    %32 = memref.load %arg1[%c4_32, %c0_33] : memref<8x2xi32, #tpu.memory_space<smem>>
    %33 = arith.index_cast %32 : i32 to index
    %c0_34 = arith.constant 0 : index
    %34 = vector.load %arg2[%33, %c0_34] : memref<64x32xf32, #tpu.memory_space<vmem>>, vector<1x32xf32>
    %c8 = arith.constant 8 : index
    %c0_35 = arith.constant 0 : index
    %35 = vector.load %arg7[%c8, %c0_35] : memref<16x32xf32, #tpu.memory_space<vmem>>, vector<1x32xf32>
    tpu.vector_store %arg7[%c8, %c0_35], %34 {strides = array<i32>} : memref<16x32xf32, #tpu.memory_space<vmem>>, vector<1x32xf32>,
    %c4_36 = arith.constant 4 : index
    %c1_37 = arith.constant 1 : index
    %36 = memref.load %arg1[%c4_36, %c1_37] : memref<8x2xi32, #tpu.memory_space<smem>>
    %37 = arith.index_cast %36 : i32 to index
    %c0_38 = arith.constant 0 : index
    %38 = vector.load %arg2[%37, %c0_38] : memref<64x32xf32, #tpu.memory_space<vmem>>, vector<1x32xf32>
    %c9 = arith.constant 9 : index
    %c0_39 = arith.constant 0 : index
    %39 = vector.load %arg7[%c9, %c0_39] : memref<16x32xf32, #tpu.memory_space<vmem>>, vector<1x32xf32>
    tpu.vector_store %arg7[%c9, %c0_39], %38 {strides = array<i32>} : memref<16x32xf32, #tpu.memory_space<vmem>>, vector<1x32xf32>,
    %c5_40 = arith.constant 5 : index
    %c0_41 = arith.constant 0 : index
    %40 = memref.load %arg1[%c5_40, %c0_41] : memref<8x2xi32, #tpu.memory_space<smem>>
    %41 = arith.index_cast %40 : i32 to index
    %c0_42 = arith.constant 0 : index
    %42 = vector.load %arg2[%41, %c0_42] : memref<64x32xf32, #tpu.memory_space<vmem>>, vector<1x32xf32>
    %c10 = arith.constant 10 : index
    %c0_43 = arith.constant 0 : index
    %43 = vector.load %arg7[%c10, %c0_43] : memref<16x32xf32, #tpu.memory_space<vmem>>, vector<1x32xf32>
    tpu.vector_store %arg7[%c10, %c0_43], %42 {strides = array<i32>} : memref<16x32xf32, #tpu.memory_space<vmem>>, vector<1x32xf32>,
    %c5_44 = arith.constant 5 : index
    %c1_45 = arith.constant 1 : index
    %44 = memref.load %arg1[%c5_44, %c1_45] : memref<8x2xi32, #tpu.memory_space<smem>>
    %45 = arith.index_cast %44 : i32 to index
    %c0_46 = arith.constant 0 : index
    %46 = vector.load %arg2[%45, %c0_46] : memref<64x32xf32, #tpu.memory_space<vmem>>, vector<1x32xf32>
    %c11 = arith.constant 11 : index
    %c0_47 = arith.constant 0 : index
    %47 = vector.load %arg7[%c11, %c0_47] : memref<16x32xf32, #tpu.memory_space<vmem>>, vector<1x32xf32>
    tpu.vector_store %arg7[%c11, %c0_47], %46 {strides = array<i32>} : memref<16x32xf32, #tpu.memory_space<vmem>>, vector<1x32xf32>,
    %c6_48 = arith.constant 6 : index
    %c0_49 = arith.constant 0 : index
    %48 = memref.load %arg1[%c6_48, %c0_49] : memref<8x2xi32, #tpu.memory_space<smem>>
    %49 = arith.index_cast %48 : i32 to index
    %c0_50 = arith.constant 0 : index
    %50 = vector.load %arg2[%49, %c0_50] : memref<64x32xf32, #tpu.memory_space<vmem>>, vector<1x32xf32>
    %c12 = arith.constant 12 : index
    %c0_51 = arith.constant 0 : index
    %51 = vector.load %arg7[%c12, %c0_51] : memref<16x32xf32, #tpu.memory_space<vmem>>, vector<1x32xf32>
    tpu.vector_store %arg7[%c12, %c0_51], %50 {strides = array<i32>} : memref<16x32xf32, #tpu.memory_space<vmem>>, vector<1x32xf32>,
    %c6_52 = arith.constant 6 : index
    %c1_53 = arith.constant 1 : index
    %52 = memref.load %arg1[%c6_52, %c1_53] : memref<8x2xi32, #tpu.memory_space<smem>>
    %53 = arith.index_cast %52 : i32 to index
    %c0_54 = arith.constant 0 : index
    %54 = vector.load %arg2[%53, %c0_54] : memref<64x32xf32, #tpu.memory_space<vmem>>, vector<1x32xf32>
    %c13 = arith.constant 13 : index
    %c0_55 = arith.constant 0 : index
    %55 = vector.load %arg7[%c13, %c0_55] : memref<16x32xf32, #tpu.memory_space<vmem>>, vector<1x32xf32>
    tpu.vector_store %arg7[%c13, %c0_55], %54 {strides = array<i32>} : memref<16x32xf32, #tpu.memory_space<vmem>>, vector<1x32xf32>,
    %c7_56 = arith.constant 7 : index
    %c0_57 = arith.constant 0 : index
    %56 = memref.load %arg1[%c7_56, %c0_57] : memref<8x2xi32, #tpu.memory_space<smem>>
    %57 = arith.index_cast %56 : i32 to index
    %c0_58 = arith.constant 0 : index
    %58 = vector.load %arg2[%57, %c0_58] : memref<64x32xf32, #tpu.memory_space<vmem>>, vector<1x32xf32>
    %c14 = arith.constant 14 : index
    %c0_59 = arith.constant 0 : index
    %59 = vector.load %arg7[%c14, %c0_59] : memref<16x32xf32, #tpu.memory_space<vmem>>, vector<1x32xf32>
    tpu.vector_store %arg7[%c14, %c0_59], %58 {strides = array<i32>} : memref<16x32xf32, #tpu.memory_space<vmem>>, vector<1x32xf32>,
    %c7_60 = arith.constant 7 : index
    %c1_61 = arith.constant 1 : index
    %60 = memref.load %arg1[%c7_60, %c1_61] : memref<8x2xi32, #tpu.memory_space<smem>>
    %61 = arith.index_cast %60 : i32 to index
    %c0_62 = arith.constant 0 : index
    %62 = vector.load %arg2[%61, %c0_62] : memref<64x32xf32, #tpu.memory_space<vmem>>, vector<1x32xf32>
    %c15 = arith.constant 15 : index
    %c0_63 = arith.constant 0 : index
    %63 = vector.load %arg7[%c15, %c0_63] : memref<16x32xf32, #tpu.memory_space<vmem>>, vector<1x32xf32>
    tpu.vector_store %arg7[%c15, %c0_63], %62 {strides = array<i32>} : memref<16x32xf32, #tpu.memory_space<vmem>>, vector<1x32xf32>,
    %c32 = arith.constant 32 : index
    %c0_64 = arith.constant 0 : index
    %64 = vector.load %arg2[%c32, %c0_64] : memref<64x32xf32, #tpu.memory_space<vmem>>, vector<32x32xf32>
    %c0_65 = arith.constant 0 : index
    %c0_66 = arith.constant 0 : index
    %65 = vector.load %arg4[%c0_65, %c0_66] : memref<2x32xf32, #tpu.memory_space<vmem>>, vector<2x32xf32>
    %c0_67 = arith.constant 0 : index
    %c0_68 = arith.constant 0 : index
    %66 = vector.load %arg7[%c0_67, %c0_68] : memref<16x32xf32, #tpu.memory_space<vmem>>, vector<2x32xf32>
    %cst = arith.constant dense<0.000000e+00> : vector<2x32xf32>
    %67 = tpu.matmul %65, %64, %cst {dimension_numbers = #tpu.dot_dimension_numbers<[1], [0], [0], [1], [0, 0, 1, 1], [], []>} : vector<2x32xf32>, vector<32x32xf32>, vector<2x32xf32> -> vector<2x32xf32>
    %68 = arith.addf %66, %67 : vector<2x32xf32>
    %69 = math.tanh %68 : vector<2x32xf32>
    %c0_69 = arith.constant 0 : index
    %c0_70 = arith.constant 0 : index
    %70 = vector.load %arg8[%c0_69, %c0_70] : memref<16x32xf32, #tpu.memory_space<vmem>>, vector<2x32xf32>
    tpu.vector_store %arg8[%c0_69, %c0_70], %69 {strides = array<i32>} : memref<16x32xf32, #tpu.memory_space<vmem>>, vector<2x32xf32>,
    %c2_71 = arith.constant 2 : index
    %c0_72 = arith.constant 0 : index
    %71 = vector.load %arg7[%c2_71, %c0_72] : memref<16x32xf32, #tpu.memory_space<vmem>>, vector<2x32xf32>
    %cst_73 = arith.constant dense<0.000000e+00> : vector<2x32xf32>
    %72 = tpu.matmul %69, %64, %cst_73 {dimension_numbers = #tpu.dot_dimension_numbers<[1], [0], [0], [1], [0, 0, 1, 1], [], []>} : vector<2x32xf32>, vector<32x32xf32>, vector<2x32xf32> -> vector<2x32xf32>
    %73 = arith.addf %71, %72 : vector<2x32xf32>
    %74 = math.tanh %73 : vector<2x32xf32>
    %c2_74 = arith.constant 2 : index
    %c0_75 = arith.constant 0 : index
    %75 = vector.load %arg8[%c2_74, %c0_75] : memref<16x32xf32, #tpu.memory_space<vmem>>, vector<2x32xf32>
    tpu.vector_store %arg8[%c2_74, %c0_75], %74 {strides = array<i32>} : memref<16x32xf32, #tpu.memory_space<vmem>>, vector<2x32xf32>,
    %c4_76 = arith.constant 4 : index
    %c0_77 = arith.constant 0 : index
    %76 = vector.load %arg7[%c4_76, %c0_77] : memref<16x32xf32, #tpu.memory_space<vmem>>, vector<2x32xf32>
    %cst_78 = arith.constant dense<0.000000e+00> : vector<2x32xf32>
    %77 = tpu.matmul %74, %64, %cst_78 {dimension_numbers = #tpu.dot_dimension_numbers<[1], [0], [0], [1], [0, 0, 1, 1], [], []>} : vector<2x32xf32>, vector<32x32xf32>, vector<2x32xf32> -> vector<2x32xf32>
    %78 = arith.addf %76, %77 : vector<2x32xf32>
    %79 = math.tanh %78 : vector<2x32xf32>
    %c4_79 = arith.constant 4 : index
    %c0_80 = arith.constant 0 : index
    %80 = vector.load %arg8[%c4_79, %c0_80] : memref<16x32xf32, #tpu.memory_space<vmem>>, vector<2x32xf32>
    tpu.vector_store %arg8[%c4_79, %c0_80], %79 {strides = array<i32>} : memref<16x32xf32, #tpu.memory_space<vmem>>, vector<2x32xf32>,
    %c6_81 = arith.constant 6 : index
    %c0_82 = arith.constant 0 : index
    %81 = vector.load %arg7[%c6_81, %c0_82] : memref<16x32xf32, #tpu.memory_space<vmem>>, vector<2x32xf32>
    %cst_83 = arith.constant dense<0.000000e+00> : vector<2x32xf32>
    %82 = tpu.matmul %79, %64, %cst_83 {dimension_numbers = #tpu.dot_dimension_numbers<[1], [0], [0], [1], [0, 0, 1, 1], [], []>} : vector<2x32xf32>, vector<32x32xf32>, vector<2x32xf32> -> vector<2x32xf32>
    %83 = arith.addf %81, %82 : vector<2x32xf32>
    %84 = math.tanh %83 : vector<2x32xf32>
    %c6_84 = arith.constant 6 : index
    %c0_85 = arith.constant 0 : index
    %85 = vector.load %arg8[%c6_84, %c0_85] : memref<16x32xf32, #tpu.memory_space<vmem>>, vector<2x32xf32>
    tpu.vector_store %arg8[%c6_84, %c0_85], %84 {strides = array<i32>} : memref<16x32xf32, #tpu.memory_space<vmem>>, vector<2x32xf32>,
    %c8_86 = arith.constant 8 : index
    %c0_87 = arith.constant 0 : index
    %86 = vector.load %arg7[%c8_86, %c0_87] : memref<16x32xf32, #tpu.memory_space<vmem>>, vector<2x32xf32>
    %cst_88 = arith.constant dense<0.000000e+00> : vector<2x32xf32>
    %87 = tpu.matmul %84, %64, %cst_88 {dimension_numbers = #tpu.dot_dimension_numbers<[1], [0], [0], [1], [0, 0, 1, 1], [], []>} : vector<2x32xf32>, vector<32x32xf32>, vector<2x32xf32> -> vector<2x32xf32>
    %88 = arith.addf %86, %87 : vector<2x32xf32>
    %89 = math.tanh %88 : vector<2x32xf32>
    %c8_89 = arith.constant 8 : index
    %c0_90 = arith.constant 0 : index
    %90 = vector.load %arg8[%c8_89, %c0_90] : memref<16x32xf32, #tpu.memory_space<vmem>>, vector<2x32xf32>
    tpu.vector_store %arg8[%c8_89, %c0_90], %89 {strides = array<i32>} : memref<16x32xf32, #tpu.memory_space<vmem>>, vector<2x32xf32>,
    %c10_91 = arith.constant 10 : index
    %c0_92 = arith.constant 0 : index
    %91 = vector.load %arg7[%c10_91, %c0_92] : memref<16x32xf32, #tpu.memory_space<vmem>>, vector<2x32xf32>
    %cst_93 = arith.constant dense<0.000000e+00> : vector<2x32xf32>
    %92 = tpu.matmul %89, %64, %cst_93 {dimension_numbers = #tpu.dot_dimension_numbers<[1], [0], [0], [1], [0, 0, 1, 1], [], []>} : vector<2x32xf32>, vector<32x32xf32>, vector<2x32xf32> -> vector<2x32xf32>
    %93 = arith.addf %91, %92 : vector<2x32xf32>
    %94 = math.tanh %93 : vector<2x32xf32>
    %c10_94 = arith.constant 10 : index
    %c0_95 = arith.constant 0 : index
    %95 = vector.load %arg8[%c10_94, %c0_95] : memref<16x32xf32, #tpu.memory_space<vmem>>, vector<2x32xf32>
    tpu.vector_store %arg8[%c10_94, %c0_95], %94 {strides = array<i32>} : memref<16x32xf32, #tpu.memory_space<vmem>>, vector<2x32xf32>,
    %c12_96 = arith.constant 12 : index
    %c0_97 = arith.constant 0 : index
    %96 = vector.load %arg7[%c12_96, %c0_97] : memref<16x32xf32, #tpu.memory_space<vmem>>, vector<2x32xf32>
    %cst_98 = arith.constant dense<0.000000e+00> : vector<2x32xf32>
    %97 = tpu.matmul %94, %64, %cst_98 {dimension_numbers = #tpu.dot_dimension_numbers<[1], [0], [0], [1], [0, 0, 1, 1], [], []>} : vector<2x32xf32>, vector<32x32xf32>, vector<2x32xf32> -> vector<2x32xf32>
    %98 = arith.addf %96, %97 : vector<2x32xf32>
    %99 = math.tanh %98 : vector<2x32xf32>
    %c12_99 = arith.constant 12 : index
    %c0_100 = arith.constant 0 : index
    %100 = vector.load %arg8[%c12_99, %c0_100] : memref<16x32xf32, #tpu.memory_space<vmem>>, vector<2x32xf32>
    tpu.vector_store %arg8[%c12_99, %c0_100], %99 {strides = array<i32>} : memref<16x32xf32, #tpu.memory_space<vmem>>, vector<2x32xf32>,
    %c14_101 = arith.constant 14 : index
    %c0_102 = arith.constant 0 : index
    %101 = vector.load %arg7[%c14_101, %c0_102] : memref<16x32xf32, #tpu.memory_space<vmem>>, vector<2x32xf32>
    %cst_103 = arith.constant dense<0.000000e+00> : vector<2x32xf32>
    %102 = tpu.matmul %99, %64, %cst_103 {dimension_numbers = #tpu.dot_dimension_numbers<[1], [0], [0], [1], [0, 0, 1, 1], [], []>} : vector<2x32xf32>, vector<32x32xf32>, vector<2x32xf32> -> vector<2x32xf32>
    %103 = arith.addf %101, %102 : vector<2x32xf32>
    %104 = math.tanh %103 : vector<2x32xf32>
    %c14_104 = arith.constant 14 : index
    %c0_105 = arith.constant 0 : index
    %105 = vector.load %arg8[%c14_104, %c0_105] : memref<16x32xf32, #tpu.memory_space<vmem>>, vector<2x32xf32>
    tpu.vector_store %arg8[%c14_104, %c0_105], %104 {strides = array<i32>} : memref<16x32xf32, #tpu.memory_space<vmem>>, vector<2x32xf32>,
    %c0_106 = arith.constant 0 : index
    %c0_107 = arith.constant 0 : index
    %106 = vector.load %arg6[%c0_106, %c0_107] : memref<2x32xf32, #tpu.memory_space<vmem>>, vector<2x32xf32>
    tpu.vector_store %arg6[%c0_106, %c0_107], %104 {strides = array<i32>} : memref<2x32xf32, #tpu.memory_space<vmem>>, vector<2x32xf32>,
    %c0_108 = arith.constant 0 : index
    %c0_109 = arith.constant 0 : index
    %107 = vector.load %arg3[%c0_108, %c0_109] : memref<33x128xf32, #tpu.memory_space<vmem>>, vector<32x128xf32>
    %c32_110 = arith.constant 32 : index
    %c0_111 = arith.constant 0 : index
    %108 = vector.load %arg3[%c32_110, %c0_111] : memref<33x128xf32, #tpu.memory_space<vmem>>, vector<1x128xf32>
    %c0_112 = arith.constant 0 : index
    %c0_113 = arith.constant 0 : index
    %109 = vector.load %arg8[%c0_112, %c0_113] : memref<16x32xf32, #tpu.memory_space<vmem>>, vector<16x32xf32>
    %cst_114 = arith.constant dense<0.000000e+00> : vector<16x128xf32>
    %110 = tpu.matmul %109, %107, %cst_114 {dimension_numbers = #tpu.dot_dimension_numbers<[1], [0], [0], [1], [0, 0, 1, 1], [], []>} : vector<16x32xf32>, vector<32x128xf32>, vector<16x128xf32> -> vector<16x128xf32>
    %111 = vector.broadcast %108 : vector<1x128xf32> to vector<16x128xf32>
    %112 = arith.addf %110, %111 : vector<16x128xf32>
    %c0_115 = arith.constant 0 : index
    %c0_116 = arith.constant 0 : index
    %113 = vector.load %arg5[%c0_115, %c0_116] : memref<16x128xf32, #tpu.memory_space<vmem>>, vector<16x128xf32>
    tpu.vector_store %arg5[%c0_115, %c0_116], %112 {strides = array<i32>} : memref<16x128xf32, #tpu.memory_space<vmem>>, vector<16x128xf32>,
    return
  }
  func.func @transform_0(%arg0: i32, %arg1: memref<8x2xi32, #tpu.memory_space<smem>>) -> (i32, i32) {
    %c0_i32 = arith.constant 0 : i32
    %c0_i32_0 = arith.constant 0 : i32
    %c0_i32_1 = arith.constant 0 : i32
    return %c0_i32, %c0_i32_0 : i32, i32
  }
  func.func @transform_1(%arg0: i32, %arg1: memref<8x2xi32, #tpu.memory_space<smem>>) -> (i32, i32) {
    %c0_i32 = arith.constant 0 : i32
    %c0_i32_0 = arith.constant 0 : i32
    %c0_i32_1 = arith.constant 0 : i32
    return %c0_i32, %c0_i32_0 : i32, i32
  }
  func.func @transform_2(%arg0: i32, %arg1: memref<8x2xi32, #tpu.memory_space<smem>>) -> (i32, i32) {
    %c0_i32 = arith.constant 0 : i32
    %c0_i32_0 = arith.constant 0 : i32
    %c0_i32_1 = arith.constant 0 : i32
    return %c0_i32, %c0_i32_0 : i32, i32
  }
  func.func @transform_3(%arg0: i32, %arg1: memref<8x2xi32, #tpu.memory_space<smem>>) -> (i32, i32) {
    %c0_i32 = arith.constant 0 : i32
    %c0_i32_0 = arith.constant 0 : i32
    %c0_i32_1 = arith.constant 0 : i32
    return %c0_i32, %c0_i32_0 : i32, i32
  }
  func.func @transform_4(%arg0: i32, %arg1: memref<8x2xi32, #tpu.memory_space<smem>>) -> (i32, i32) {
    %c0_i32 = arith.constant 0 : i32
    %c0_i32_0 = arith.constant 0 : i32
    %c0_i32_1 = arith.constant 0 : i32
    return %c0_i32, %c0_i32_0 : i32, i32
  }
}

</mosaic_0001>

<llo_original>
// kernel: rnn_model_forward.1
$region0: #{rnn_model_forward.1}
  #allocation0 [shape = 'u32[]', space=smem, size = 0x4, offset = 0x4, fixed_abs, tag = 'smem constant byte address 0x4 - core index']
  #allocation1 [shape = 'u32[144,128]{1,0:T(1,128)}', space=vmem, size = 0x12000, scoped, tag = 'internal scratch']
  #allocation2 [shape = 'f32[16,32]{1,0:T(8,128)}', space=vmem, size = 0x2000, scoped, tag = 'scratch operand']
  #allocation3 [shape = 'f32[16,32]{1,0:T(8,128)}', space=vmem, size = 0x2000, scoped, tag = 'scratch operand']
  #allocation4 [shape = 's32[1]{0}', space=sflag, size = 0x4, scoped, tag = 'scoped memory for rnn_model_forward.1']
  #allocation5 [shape = 'u8[4096]{0}', space=smem, size = 0x1000, scoped, tag = 'prefetched SMEM operand 0']
  %s0 = inlined_call_operand.vmem [shape: s32[8,2], index: 0, kind: input, shape index: {}]
  %s1 = inlined_call_operand.vmem [shape: f32[64,32], index: 1, kind: input, shape index: {}]
  %s2 = inlined_call_operand.vmem [shape: f32[33,128], index: 2, kind: input, shape index: {}]
  %s3 = inlined_call_operand.vmem [shape: f32[2,32], index: 3, kind: input, shape index: {}, may-alias: {3,5}]
  %s4 = inlined_call_operand.hbm [shape: f32[16,128], index: 4, kind: output, shape index: {0}]
  %s5 = inlined_call_operand.vmem [shape: f32[2,32], index: 5, kind: output, shape index: {1}, may-alias: {3,5}]
  %6 = xla_tuple %s4, %s5
  %s7 = sld [smem:[#allocation0]]
  $region30: #{rnn_model_forward.1} parent=0
    _
  %s9 = ssub.s32 1, %s7
  %s10 = scalar_select 0, %s9, %s7
  %s11 = sshll.u32 %s0, 4
  %s12 = int_to_ptr.vmem [resolvable:$true] %s11
  %14 = dma.vmem_to_smem %s12, 128, [#allocation5], [#allocation4]
  %15 = dma.done [#allocation4], 128
  %16 = sfence
  $region1: #{rnn_model_forward.1} parent=0
    #allocation6 [shape = 'u8[8192]{0}', space=vmem, size = 0x2000, scoped, tag = 'output window, operand 0, single buffered']
    #allocation7 [shape = 's32[1]{0}', space=sflag, size = 0x4, scoped, tag = 'scoped memory for rnn_model_forward.1']
    %17 = vsyncpa [#allocation7], 0
    // Predicated region
    $region2: #{rnn_model_forward.1} parent=1 // pred_check
      _
    $region3: #{rnn_model_forward.1} parent=1 // pred_check_branch
      %19 = sbr.rel (0) target = $region5
    $region4: #{rnn_model_forward.1} parent=1 // pred_region
      _
    $region5: #{rnn_model_forward.1} parent=1 // pred_fallthru
      _
    // Predicated region
    $region6: #{rnn_model_forward.1} parent=1 // pred_check
      _
    $region7: #{rnn_model_forward.1} parent=1 // pred_check_branch
      %21 = sbr.rel (0) target = $region9
    $region8: #{rnn_model_forward.1} parent=1 // pred_region
      _
    $region9: #{rnn_model_forward.1} parent=1 // pred_fallthru
      _
    // Predicated region
    $region10: #{rnn_model_forward.1} parent=1 // pred_check
      _
    $region11: #{rnn_model_forward.1} parent=1 // pred_check_branch
      %23 = sbr.rel (0) target = $region13
    $region12: #{rnn_model_forward.1} parent=1 // pred_region
      _
    $region13: #{rnn_model_forward.1} parent=1 // pred_fallthru
      _
    %s24 = sld [smem:[#allocation5]]
    %s25 = scalar_lea.vmem %s1, %s24
    %v26 = vld [vmem:[%s25] sm:$0x1]
    %vm27 = vcmask 253952
    %28 = vst.msk [vmem:[#allocation2] sm:$0x1] %vm27, %v26
    %s29 = sld [smem:[#allocation5 + $0x1]]
    %s30 = scalar_lea.vmem %s1, %s29
    %v31 = vld [vmem:[%s30] sm:$0x1]
    %32 = vst.msk [vmem:[#allocation2 + $0x1] sm:$0x1] %vm27, %v31
    %s33 = sld [smem:[#allocation5 + $0x80]]
    %s34 = scalar_lea.vmem %s1, %s33
    %v35 = vld [vmem:[%s34] sm:$0x1]
    %36 = vst.msk [vmem:[#allocation2 + $0x2] sm:$0x1] %vm27, %v35
    %s37 = sld [smem:[#allocation5 + $0x81]]
    %s38 = scalar_lea.vmem %s1, %s37
    %v39 = vld [vmem:[%s38] sm:$0x1]
    %40 = vst.msk [vmem:[#allocation2 + $0x3] sm:$0x1] %vm27, %v39
    %s41 = sld [smem:[#allocation5 + $0x100]]
    %s42 = scalar_lea.vmem %s1, %s41
    %v43 = vld [vmem:[%s42] sm:$0x1]
    %44 = vst.msk [vmem:[#allocation2 + $0x4] sm:$0x1] %vm27, %v43
    %s45 = sld [smem:[#allocation5 + $0x101]]
    %s46 = scalar_lea.vmem %s1, %s45
    %v47 = vld [vmem:[%s46] sm:$0x1]
    %48 = vst.msk [vmem:[#allocation2 + $0x5] sm:$0x1] %vm27, %v47
    %s49 = sld [smem:[#allocation5 + $0x180]]
    %s50 = scalar_lea.vmem %s1, %s49
    %v51 = vld [vmem:[%s50] sm:$0x1]
    %52 = vst.msk [vmem:[#allocation2 + $0x6] sm:$0x1] %vm27, %v51
    %s53 = sld [smem:[#allocation5 + $0x181]]
    %s54 = scalar_lea.vmem %s1, %s53
    %v55 = vld [vmem:[%s54] sm:$0x1]
    %56 = vst.msk [vmem:[#allocation2 + $0x7] sm:$0x1] %vm27, %v55
    %s57 = sld [smem:[#allocation5 + $0x200]]
    %s58 = scalar_lea.vmem %s1, %s57
    %v59 = vld [vmem:[%s58] sm:$0x1]
    %60 = vst.msk [vmem:[#allocation2 + $0x8] sm:$0x1] %vm27, %v59
    %s61 = sld [smem:[#allocation5 + $0x201]]
    %s62 = scalar_lea.vmem %s1, %s61
    %v63 = vld [vmem:[%s62] sm:$0x1]
    %64 = vst.msk [vmem:[#allocation2 + $0x9] sm:$0x1] %vm27, %v63
    %s65 = sld [smem:[#allocation5 + $0x280]]
    %s66 = scalar_lea.vmem %s1, %s65
    %v67 = vld [vmem:[%s66] sm:$0x1]
    %68 = vst.msk [vmem:[#allocation2 + $0xa] sm:$0x1] %vm27, %v67
    %s69 = sld [smem:[#allocation5 + $0x281]]
    %s70 = scalar_lea.vmem %s1, %s69
    %v71 = vld [vmem:[%s70] sm:$0x1]
    %72 = vst.msk [vmem:[#allocation2 + $0xb] sm:$0x1] %vm27, %v71
    %s73 = sld [smem:[#allocation5 + $0x300]]
    %s74 = scalar_lea.vmem %s1, %s73
    %v75 = vld [vmem:[%s74] sm:$0x1]
    %76 = vst.msk [vmem:[#allocation2 + $0xc] sm:$0x1] %vm27, %v75
    %s77 = sld [smem:[#allocation5 + $0x301]]
    %s78 = scalar_lea.vmem %s1, %s77
    %v79 = vld [vmem:[%s78] sm:$0x1]
    %80 = vst.msk [vmem:[#allocation2 + $0xd] sm:$0x1] %vm27, %v79
    %s81 = sld [smem:[#allocation5 + $0x380]]
    %s82 = scalar_lea.vmem %s1, %s81
    %v83 = vld [vmem:[%s82] sm:$0x1]
    %84 = vst.msk [vmem:[#allocation2 + $0xe] sm:$0x1] %vm27, %v83
    %s85 = sld [smem:[#allocation5 + $0x381]]
    %s86 = scalar_lea.vmem %s1, %s85
    %v87 = vld [vmem:[%s86] sm:$0x1]
    %88 = vst.msk [vmem:[#allocation2 + $0xf] sm:$0x1] %vm27, %v87
    %v89 = vld [vmem:[%s1 + $0x20] sm:$0xff]
    %v90 = vld [vmem:[%s1 + $0x28] sm:$0xff]
    %v91 = vld [vmem:[%s1 + $0x30] sm:$0xff]
    %v92 = vld [vmem:[%s1 + $0x38] sm:$0xff]
    %v93 = vld [vmem:[%s3] sm:$0x3]
    %v94 = vld [vmem:[#allocation2] sm:$0x3]
    %vm95 = vcmask 261120
    %v97 = vsel %vm95, %v93, 0
    %99 = vmatprep.subr.mxu0 0.0
    %100 = vmatpush1.msra.mxu0 %v89
    %101 = vmatprep.subr.mxu0 0.0
    %102 = vmatpush1.msra.mxu0 %v90
    %103 = vmatprep.subr.mxu0 0.0
    %104 = vmatpush1.msra.mxu0 %v91
    %105 = vmatprep.subr.mxu0 0.0
    %106 = vmatpush1.msra.mxu0 %v92
    %107 = vmatprep.subr.mxu0 0.0
    %108 = vmatpush1.msra.mxu0 0.0
    %109 = vmatprep.subr.mxu0 0.0
    %110 = vmatpush1.msra.mxu0 0.0
    %111 = vmatprep.subr.mxu0 0.0
    %112 = vmatpush1.msra.mxu0 0.0
    %113 = vmatprep.subr.mxu0 0.0
    %114 = vmatpush1.msra.mxu0 0.0
    %115 = vmatprep.subr.mxu0 0.0
    %116 = vmatpush1.msra.mxu0 0.0
    %117 = vmatprep.subr.mxu0 0.0
    %118 = vmatpush1.msra.mxu0 0.0
    %119 = vmatprep.subr.mxu0 0.0
    %120 = vmatpush1.msra.mxu0 0.0
    %121 = vmatprep.subr.mxu0 0.0
    %122 = vmatpush1.msra.mxu0 0.0
    %123 = vmatprep.subr.mxu0 0.0
    %124 = vmatpush1.msra.mxu0 0.0
    %125 = vmatprep.subr.mxu0 0.0
    %126 = vmatpush1.msra.mxu0 0.0
    %127 = vmatprep.subr.mxu0 0.0
    %128 = vmatpush1.msra.mxu0 0.0
    %129 = vmatprep.subr.mxu0 0.0
    %130 = vmatpush1.msra.mxu0 0.0
    %131 = vmatprep.subr.mxu0 0.0
    %132 = vmatpush1.msra.mxu0 0.0
    %133 = vmatprep.subr.mxu0 0.0
    %134 = vmatpush1.msra.mxu0 0.0
    %135 = vmatprep.subr.mxu0 0.0
    %136 = vmatpush1.msra.mxu0 0.0
    %137 = vmatprep.subr.mxu0 0.0
    %138 = vmatpush1.msra.mxu0 0.0
    %139 = vmatprep.subr.mxu0 0.0
    %140 = vmatpush1.msra.mxu0 0.0
    %141 = vmatprep.subr.mxu0 0.0
    %142 = vmatpush1.msra.mxu0 0.0
    %143 = vmatprep.subr.mxu0 0.0
    %144 = vmatpush1.msra.mxu0 0.0
    %145 = vmatprep.subr.mxu0 0.0
    %146 = vmatpush1.msra.mxu0 0.0
    %147 = vmatprep.subr.mxu0 0.0
    %148 = vmatpush1.msra.mxu0 0.0
    %149 = vmatprep.subr.mxu0 0.0
    %150 = vmatpush1.msra.mxu0 0.0
    %151 = vmatprep.subr.mxu0 0.0
    %152 = vmatpush1.msra.mxu0 0.0
    %153 = vmatprep.subr.mxu0 0.0
    %154 = vmatpush1.msra.mxu0 0.0
    %155 = vmatprep.subr.mxu0 0.0
    %156 = vmatpush1.msra.mxu0 0.0
    %157 = vmatprep.subr.mxu0 0.0
    %158 = vmatpush1.msra.mxu0 0.0
    %159 = vmatprep.subr.mxu0 0.0
    %160 = vmatpush1.msra.mxu0 0.0
    %161 = vmatprep.subr.mxu0 0.0
    %162 = vmatpush1.msra.mxu0 0.0
    %163 = vmatprep.mubr.f32.mxu0 0.0
    %164 = vmatmul.mubr.f32.gmra.mrb[0].mxu0 %v97
    %v165 = vpop.f32.mrb[0].mxu0
    %v166 = vadd.f32 0.0, %v165
    %v167 = vpop.f32.mrb[0].mxu0
    %168 = vdwg.mxu0
    %v169 = vadd.f32 %v94, %v166
    %v170 = vtanh.pop %v169
    %vm171 = vcmask 254976
    %172 = vst.msk [vmem:[#allocation3] sm:$0x3] %vm171, %v170
    %v173 = vld [vmem:[#allocation2 + $0x2] sm:$0x3]
    %v175 = vsel %vm95, %v170, 0
    %177 = vmatprep.subr.mxu0 0.0
    %178 = vmatpush1.msra.mxu0 %v89
    %179 = vmatprep.subr.mxu0 0.0
    %180 = vmatpush1.msra.mxu0 %v90
    %181 = vmatprep.subr.mxu0 0.0
    %182 = vmatpush1.msra.mxu0 %v91
    %183 = vmatprep.subr.mxu0 0.0
    %184 = vmatpush1.msra.mxu0 %v92
    %185 = vmatprep.subr.mxu0 0.0
    %186 = vmatpush1.msra.mxu0 0.0
    %187 = vmatprep.subr.mxu0 0.0
    %188 = vmatpush1.msra.mxu0 0.0
    %189 = vmatprep.subr.mxu0 0.0
    %190 = vmatpush1.msra.mxu0 0.0
    %191 = vmatprep.subr.mxu0 0.0
    %192 = vmatpush1.msra.mxu0 0.0
    %193 = vmatprep.subr.mxu0 0.0
    %194 = vmatpush1.msra.mxu0 0.0
    %195 = vmatprep.subr.mxu0 0.0
    %196 = vmatpush1.msra.mxu0 0.0
    %197 = vmatprep.subr.mxu0 0.0
    %198 = vmatpush1.msra.mxu0 0.0
    %199 = vmatprep.subr.mxu0 0.0
    %200 = vmatpush1.msra.mxu0 0.0
    %201 = vmatprep.subr.mxu0 0.0
    %202 = vmatpush1.msra.mxu0 0.0
    %203 = vmatprep.subr.mxu0 0.0
    %204 = vmatpush1.msra.mxu0 0.0
    %205 = vmatprep.subr.mxu0 0.0
    %206 = vmatpush1.msra.mxu0 0.0
    %207 = vmatprep.subr.mxu0 0.0
    %208 = vmatpush1.msra.mxu0 0.0
    %209 = vmatprep.subr.mxu0 0.0
    %210 = vmatpush1.msra.mxu0 0.0
    %211 = vmatprep.subr.mxu0 0.0
    %212 = vmatpush1.msra.mxu0 0.0
    %213 = vmatprep.subr.mxu0 0.0
    %214 = vmatpush1.msra.mxu0 0.0
    %215 = vmatprep.subr.mxu0 0.0
    %216 = vmatpush1.msra.mxu0 0.0
    %217 = vmatprep.subr.mxu0 0.0
    %218 = vmatpush1.msra.mxu0 0.0
    %219 = vmatprep.subr.mxu0 0.0
    %220 = vmatpush1.msra.mxu0 0.0
    %221 = vmatprep.subr.mxu0 0.0
    %222 = vmatpush1.msra.mxu0 0.0
    %223 = vmatprep.subr.mxu0 0.0
    %224 = vmatpush1.msra.mxu0 0.0
    %225 = vmatprep.subr.mxu0 0.0
    %226 = vmatpush1.msra.mxu0 0.0
    %227 = vmatprep.subr.mxu0 0.0
    %228 = vmatpush1.msra.mxu0 0.0
    %229 = vmatprep.subr.mxu0 0.0
    %230 = vmatpush1.msra.mxu0 0.0
    %231 = vmatprep.subr.mxu0 0.0
    %232 = vmatpush1.msra.mxu0 0.0
    %233 = vmatprep.subr.mxu0 0.0
    %234 = vmatpush1.msra.mxu0 0.0
    %235 = vmatprep.subr.mxu0 0.0
    %236 = vmatpush1.msra.mxu0 0.0
    %237 = vmatprep.subr.mxu0 0.0
    %238 = vmatpush1.msra.mxu0 0.0
    %239 = vmatprep.subr.mxu0 0.0
    %240 = vmatpush1.msra.mxu0 0.0
    %241 = vmatprep.mubr.f32.mxu0 0.0
    %242 = vmatmul.mubr.f32.gmra.mrb[0].mxu0 %v175
    %v243 = vpop.f32.mrb[0].mxu0
    %v244 = vadd.f32 0.0, %v243
    %v245 = vpop.f32.mrb[0].mxu0
    %246 = vdwg.mxu0
    %v247 = vadd.f32 %v173, %v244
    %v248 = vtanh.pop %v247
    %249 = vst.msk [vmem:[#allocation3 + $0x2] sm:$0x3] %vm171, %v248
    %v250 = vld [vmem:[#allocation2 + $0x4] sm:$0x3]
    %v252 = vsel %vm95, %v248, 0
    %254 = vmatprep.subr.mxu0 0.0
    %255 = vmatpush1.msra.mxu0 %v89
    %256 = vmatprep.subr.mxu0 0.0
    %257 = vmatpush1.msra.mxu0 %v90
    %258 = vmatprep.subr.mxu0 0.0
    %259 = vmatpush1.msra.mxu0 %v91
    %260 = vmatprep.subr.mxu0 0.0
    %261 = vmatpush1.msra.mxu0 %v92
    %262 = vmatprep.subr.mxu0 0.0
    %263 = vmatpush1.msra.mxu0 0.0
    %264 = vmatprep.subr.mxu0 0.0
    %265 = vmatpush1.msra.mxu0 0.0
    %266 = vmatprep.subr.mxu0 0.0
    %267 = vmatpush1.msra.mxu0 0.0
    %268 = vmatprep.subr.mxu0 0.0
    %269 = vmatpush1.msra.mxu0 0.0
    %270 = vmatprep.subr.mxu0 0.0
    %271 = vmatpush1.msra.mxu0 0.0
    %272 = vmatprep.subr.mxu0 0.0
    %273 = vmatpush1.msra.mxu0 0.0
    %274 = vmatprep.subr.mxu0 0.0
    %275 = vmatpush1.msra.mxu0 0.0
    %276 = vmatprep.subr.mxu0 0.0
    %277 = vmatpush1.msra.mxu0 0.0
    %278 = vmatprep.subr.mxu0 0.0
    %279 = vmatpush1.msra.mxu0 0.0
    %280 = vmatprep.subr.mxu0 0.0
    %281 = vmatpush1.msra.mxu0 0.0
    %282 = vmatprep.subr.mxu0 0.0
    %283 = vmatpush1.msra.mxu0 0.0
    %284 = vmatprep.subr.mxu0 0.0
    %285 = vmatpush1.msra.mxu0 0.0
    %286 = vmatprep.subr.mxu0 0.0
    %287 = vmatpush1.msra.mxu0 0.0
    %288 = vmatprep.subr.mxu0 0.0
    %289 = vmatpush1.msra.mxu0 0.0
    %290 = vmatprep.subr.mxu0 0.0
    %291 = vmatpush1.msra.mxu0 0.0
    %292 = vmatprep.subr.mxu0 0.0
    %293 = vmatpush1.msra.mxu0 0.0
    %294 = vmatprep.subr.mxu0 0.0
    %295 = vmatpush1.msra.mxu0 0.0
    %296 = vmatprep.subr.mxu0 0.0
    %297 = vmatpush1.msra.mxu0 0.0
    %298 = vmatprep.subr.mxu0 0.0
    %299 = vmatpush1.msra.mxu0 0.0
    %300 = vmatprep.subr.mxu0 0.0
    %301 = vmatpush1.msra.mxu0 0.0
    %302 = vmatprep.subr.mxu0 0.0
    %303 = vmatpush1.msra.mxu0 0.0
    %304 = vmatprep.subr.mxu0 0.0
    %305 = vmatpush1.msra.mxu0 0.0
    %306 = vmatprep.subr.mxu0 0.0
    %307 = vmatpush1.msra.mxu0 0.0
    %308 = vmatprep.subr.mxu0 0.0
    %309 = vmatpush1.msra.mxu0 0.0
    %310 = vmatprep.subr.mxu0 0.0
    %311 = vmatpush1.msra.mxu0 0.0
    %312 = vmatprep.subr.mxu0 0.0
    %313 = vmatpush1.msra.mxu0 0.0
    %314 = vmatprep.subr.mxu0 0.0
    %315 = vmatpush1.msra.mxu0 0.0
    %316 = vmatprep.subr.mxu0 0.0
    %317 = vmatpush1.msra.mxu0 0.0
    %318 = vmatprep.mubr.f32.mxu0 0.0
    %319 = vmatmul.mubr.f32.gmra.mrb[0].mxu0 %v252
    %v320 = vpop.f32.mrb[0].mxu0
    %v321 = vadd.f32 0.0, %v320
    %v322 = vpop.f32.mrb[0].mxu0
    %323 = vdwg.mxu0
    %v324 = vadd.f32 %v250, %v321
    %v325 = vtanh.pop %v324
    %326 = vst.msk [vmem:[#allocation3 + $0x4] sm:$0x3] %vm171, %v325
    %v327 = vld [vmem:[#allocation2 + $0x6] sm:$0x3]
    %v329 = vsel %vm95, %v325, 0
    %331 = vmatprep.subr.mxu0 0.0
    %332 = vmatpush1.msra.mxu0 %v89
    %333 = vmatprep.subr.mxu0 0.0
    %334 = vmatpush1.msra.mxu0 %v90
    %335 = vmatprep.subr.mxu0 0.0
    %336 = vmatpush1.msra.mxu0 %v91
    %337 = vmatprep.subr.mxu0 0.0
    %338 = vmatpush1.msra.mxu0 %v92
    %339 = vmatprep.subr.mxu0 0.0
    %340 = vmatpush1.msra.mxu0 0.0
    %341 = vmatprep.subr.mxu0 0.0
    %342 = vmatpush1.msra.mxu0 0.0
    %343 = vmatprep.subr.mxu0 0.0
    %344 = vmatpush1.msra.mxu0 0.0
    %345 = vmatprep.subr.mxu0 0.0
    %346 = vmatpush1.msra.mxu0 0.0
    %347 = vmatprep.subr.mxu0 0.0
    %348 = vmatpush1.msra.mxu0 0.0
    %349 = vmatprep.subr.mxu0 0.0
    %350 = vmatpush1.msra.mxu0 0.0
    %351 = vmatprep.subr.mxu0 0.0
    %352 = vmatpush1.msra.mxu0 0.0
    %353 = vmatprep.subr.mxu0 0.0
    %354 = vmatpush1.msra.mxu0 0.0
    %355 = vmatprep.subr.mxu0 0.0
    %356 = vmatpush1.msra.mxu0 0.0
    %357 = vmatprep.subr.mxu0 0.0
    %358 = vmatpush1.msra.mxu0 0.0
    %359 = vmatprep.subr.mxu0 0.0
    %360 = vmatpush1.msra.mxu0 0.0
    %361 = vmatprep.subr.mxu0 0.0
    %362 = vmatpush1.msra.mxu0 0.0
    %363 = vmatprep.subr.mxu0 0.0
    %364 = vmatpush1.msra.mxu0 0.0
    %365 = vmatprep.subr.mxu0 0.0
    %366 = vmatpush1.msra.mxu0 0.0
    %367 = vmatprep.subr.mxu0 0.0
    %368 = vmatpush1.msra.mxu0 0.0
    %369 = vmatprep.subr.mxu0 0.0
    %370 = vmatpush1.msra.mxu0 0.0
    %371 = vmatprep.subr.mxu0 0.0
    %372 = vmatpush1.msra.mxu0 0.0
    %373 = vmatprep.subr.mxu0 0.0
    %374 = vmatpush1.msra.mxu0 0.0
    %375 = vmatprep.subr.mxu0 0.0
    %376 = vmatpush1.msra.mxu0 0.0
    %377 = vmatprep.subr.mxu0 0.0
    %378 = vmatpush1.msra.mxu0 0.0
    %379 = vmatprep.subr.mxu0 0.0
    %380 = vmatpush1.msra.mxu0 0.0
    %381 = vmatprep.subr.mxu0 0.0
    %382 = vmatpush1.msra.mxu0 0.0
    %383 = vmatprep.subr.mxu0 0.0
    %384 = vmatpush1.msra.mxu0 0.0
    %385 = vmatprep.subr.mxu0 0.0
    %386 = vmatpush1.msra.mxu0 0.0
    %387 = vmatprep.subr.mxu0 0.0
    %388 = vmatpush1.msra.mxu0 0.0
    %389 = vmatprep.subr.mxu0 0.0
    %390 = vmatpush1.msra.mxu0 0.0
    %391 = vmatprep.subr.mxu0 0.0
    %392 = vmatpush1.msra.mxu0 0.0
    %393 = vmatprep.subr.mxu0 0.0
    %394 = vmatpush1.msra.mxu0 0.0
    %395 = vmatprep.mubr.f32.mxu0 0.0
    %396 = vmatmul.mubr.f32.gmra.mrb[0].mxu0 %v329
    %v397 = vpop.f32.mrb[0].mxu0
    %v398 = vadd.f32 0.0, %v397
    %v399 = vpop.f32.mrb[0].mxu0
    %400 = vdwg.mxu0
    %v401 = vadd.f32 %v327, %v398
    %v402 = vtanh.pop %v401
    %403 = vst.msk [vmem:[#allocation3 + $0x6] sm:$0x3] %vm171, %v402
    %v404 = vld [vmem:[#allocation2 + $0x8] sm:$0x3]
    %v406 = vsel %vm95, %v402, 0
    %408 = vmatprep.subr.mxu0 0.0
    %409 = vmatpush1.msra.mxu0 %v89
    %410 = vmatprep.subr.mxu0 0.0
    %411 = vmatpush1.msra.mxu0 %v90
    %412 = vmatprep.subr.mxu0 0.0
    %413 = vmatpush1.msra.mxu0 %v91
    %414 = vmatprep.subr.mxu0 0.0
    %415 = vmatpush1.msra.mxu0 %v92
    %416 = vmatprep.subr.mxu0 0.0
    %417 = vmatpush1.msra.mxu0 0.0
    %418 = vmatprep.subr.mxu0 0.0
    %419 = vmatpush1.msra.mxu0 0.0
    %420 = vmatprep.subr.mxu0 0.0
    %421 = vmatpush1.msra.mxu0 0.0
    %422 = vmatprep.subr.mxu0 0.0
    %423 = vmatpush1.msra.mxu0 0.0
    %424 = vmatprep.subr.mxu0 0.0
    %425 = vmatpush1.msra.mxu0 0.0
    %426 = vmatprep.subr.mxu0 0.0
    %427 = vmatpush1.msra.mxu0 0.0
    %428 = vmatprep.subr.mxu0 0.0
    %429 = vmatpush1.msra.mxu0 0.0
    %430 = vmatprep.subr.mxu0 0.0
    %431 = vmatpush1.msra.mxu0 0.0
    %432 = vmatprep.subr.mxu0 0.0
    %433 = vmatpush1.msra.mxu0 0.0
    %434 = vmatprep.subr.mxu0 0.0
    %435 = vmatpush1.msra.mxu0 0.0
    %436 = vmatprep.subr.mxu0 0.0
    %437 = vmatpush1.msra.mxu0 0.0
    %438 = vmatprep.subr.mxu0 0.0
    %439 = vmatpush1.msra.mxu0 0.0
    %440 = vmatprep.subr.mxu0 0.0
    %441 = vmatpush1.msra.mxu0 0.0
    %442 = vmatprep.subr.mxu0 0.0
    %443 = vmatpush1.msra.mxu0 0.0
    %444 = vmatprep.subr.mxu0 0.0
    %445 = vmatpush1.msra.mxu0 0.0
    %446 = vmatprep.subr.mxu0 0.0
    %447 = vmatpush1.msra.mxu0 0.0
    %448 = vmatprep.subr.mxu0 0.0
    %449 = vmatpush1.msra.mxu0 0.0
    %450 = vmatprep.subr.mxu0 0.0
    %451 = vmatpush1.msra.mxu0 0.0
    %452 = vmatprep.subr.mxu0 0.0
    %453 = vmatpush1.msra.mxu0 0.0
    %454 = vmatprep.subr.mxu0 0.0
    %455 = vmatpush1.msra.mxu0 0.0
    %456 = vmatprep.subr.mxu0 0.0
    %457 = vmatpush1.msra.mxu0 0.0
    %458 = vmatprep.subr.mxu0 0.0
    %459 = vmatpush1.msra.mxu0 0.0
    %460 = vmatprep.subr.mxu0 0.0
    %461 = vmatpush1.msra.mxu0 0.0
    %462 = vmatprep.subr.mxu0 0.0
    %463 = vmatpush1.msra.mxu0 0.0
    %464 = vmatprep.subr.mxu0 0.0
    %465 = vmatpush1.msra.mxu0 0.0
    %466 = vmatprep.subr.mxu0 0.0
    %467 = vmatpush1.msra.mxu0 0.0
    %468 = vmatprep.subr.mxu0 0.0
    %469 = vmatpush1.msra.mxu0 0.0
    %470 = vmatprep.subr.mxu0 0.0
    %471 = vmatpush1.msra.mxu0 0.0
    %472 = vmatprep.mubr.f32.mxu0 0.0
    %473 = vmatmul.mubr.f32.gmra.mrb[0].mxu0 %v406
    %v474 = vpop.f32.mrb[0].mxu0
    %v475 = vadd.f32 0.0, %v474
    %v476 = vpop.f32.mrb[0].mxu0
    %477 = vdwg.mxu0
    %v478 = vadd.f32 %v404, %v475
    %v479 = vtanh.pop %v478
    %480 = vst.msk [vmem:[#allocation3 + $0x8] sm:$0x3] %vm171, %v479
    %v481 = vld [vmem:[#allocation2 + $0xa] sm:$0x3]
    %v483 = vsel %vm95, %v479, 0
    %485 = vmatprep.subr.mxu0 0.0
    %486 = vmatpush1.msra.mxu0 %v89
    %487 = vmatprep.subr.mxu0 0.0
    %488 = vmatpush1.msra.mxu0 %v90
    %489 = vmatprep.subr.mxu0 0.0
    %490 = vmatpush1.msra.mxu0 %v91
    %491 = vmatprep.subr.mxu0 0.0
    %492 = vmatpush1.msra.mxu0 %v92
    %493 = vmatprep.subr.mxu0 0.0
    %494 = vmatpush1.msra.mxu0 0.0
    %495 = vmatprep.subr.mxu0 0.0
    %496 = vmatpush1.msra.mxu0 0.0
    %497 = vmatprep.subr.mxu0 0.0
    %498 = vmatpush1.msra.mxu0 0.0
    %499 = vmatprep.subr.mxu0 0.0
    %500 = vmatpush1.msra.mxu0 0.0
    %501 = vmatprep.subr.mxu0 0.0
    %502 = vmatpush1.msra.mxu0 0.0
    %503 = vmatprep.subr.mxu0 0.0
    %504 = vmatpush1.msra.mxu0 0.0
    %505 = vmatprep.subr.mxu0 0.0
    %506 = vmatpush1.msra.mxu0 0.0
    %507 = vmatprep.subr.mxu0 0.0
    %508 = vmatpush1.msra.mxu0 0.0
    %509 = vmatprep.subr.mxu0 0.0
    %510 = vmatpush1.msra.mxu0 0.0
    %511 = vmatprep.subr.mxu0 0.0
    %512 = vmatpush1.msra.mxu0 0.0
    %513 = vmatprep.subr.mxu0 0.0
    %514 = vmatpush1.msra.mxu0 0.0
    %515 = vmatprep.subr.mxu0 0.0
    %516 = vmatpush1.msra.mxu0 0.0
    %517 = vmatprep.subr.mxu0 0.0
    %518 = vmatpush1.msra.mxu0 0.0
    %519 = vmatprep.subr.mxu0 0.0
    %520 = vmatpush1.msra.mxu0 0.0
    %521 = vmatprep.subr.mxu0 0.0
    %522 = vmatpush1.msra.mxu0 0.0
    %523 = vmatprep.subr.mxu0 0.0
    %524 = vmatpush1.msra.mxu0 0.0
    %525 = vmatprep.subr.mxu0 0.0
    %526 = vmatpush1.msra.mxu0 0.0
    %527 = vmatprep.subr.mxu0 0.0
    %528 = vmatpush1.msra.mxu0 0.0
    %529 = vmatprep.subr.mxu0 0.0
    %530 = vmatpush1.msra.mxu0 0.0
    %531 = vmatprep.subr.mxu0 0.0
    %532 = vmatpush1.msra.mxu0 0.0
    %533 = vmatprep.subr.mxu0 0.0
    %534 = vmatpush1.msra.mxu0 0.0
    %535 = vmatprep.subr.mxu0 0.0
    %536 = vmatpush1.msra.mxu0 0.0
    %537 = vmatprep.subr.mxu0 0.0
    %538 = vmatpush1.msra.mxu0 0.0
    %539 = vmatprep.subr.mxu0 0.0
    %540 = vmatpush1.msra.mxu0 0.0
    %541 = vmatprep.subr.mxu0 0.0
    %542 = vmatpush1.msra.mxu0 0.0
    %543 = vmatprep.subr.mxu0 0.0
    %544 = vmatpush1.msra.mxu0 0.0
    %545 = vmatprep.subr.mxu0 0.0
    %546 = vmatpush1.msra.mxu0 0.0
    %547 = vmatprep.subr.mxu0 0.0
    %548 = vmatpush1.msra.mxu0 0.0
    %549 = vmatprep.mubr.f32.mxu0 0.0
    %550 = vmatmul.mubr.f32.gmra.mrb[0].mxu0 %v483
    %v551 = vpop.f32.mrb[0].mxu0
    %v552 = vadd.f32 0.0, %v551
    %v553 = vpop.f32.mrb[0].mxu0
    %554 = vdwg.mxu0
    %v555 = vadd.f32 %v481, %v552
    %v556 = vtanh.pop %v555
    %557 = vst.msk [vmem:[#allocation3 + $0xa] sm:$0x3] %vm171, %v556
    %v558 = vld [vmem:[#allocation2 + $0xc] sm:$0x3]
    %v560 = vsel %vm95, %v556, 0
    %562 = vmatprep.subr.mxu0 0.0
    %563 = vmatpush1.msra.mxu0 %v89
    %564 = vmatprep.subr.mxu0 0.0
    %565 = vmatpush1.msra.mxu0 %v90
    %566 = vmatprep.subr.mxu0 0.0
    %567 = vmatpush1.msra.mxu0 %v91
    %568 = vmatprep.subr.mxu0 0.0
    %569 = vmatpush1.msra.mxu0 %v92
    %570 = vmatprep.subr.mxu0 0.0
    %571 = vmatpush1.msra.mxu0 0.0
    %572 = vmatprep.subr.mxu0 0.0
    %573 = vmatpush1.msra.mxu0 0.0
    %574 = vmatprep.subr.mxu0 0.0
    %575 = vmatpush1.msra.mxu0 0.0
    %576 = vmatprep.subr.mxu0 0.0
    %577 = vmatpush1.msra.mxu0 0.0
    %578 = vmatprep.subr.mxu0 0.0
    %579 = vmatpush1.msra.mxu0 0.0
    %580 = vmatprep.subr.mxu0 0.0
    %581 = vmatpush1.msra.mxu0 0.0
    %582 = vmatprep.subr.mxu0 0.0
    %583 = vmatpush1.msra.mxu0 0.0
    %584 = vmatprep.subr.mxu0 0.0
    %585 = vmatpush1.msra.mxu0 0.0
    %586 = vmatprep.subr.mxu0 0.0
    %587 = vmatpush1.msra.mxu0 0.0
    %588 = vmatprep.subr.mxu0 0.0
    %589 = vmatpush1.msra.mxu0 0.0
    %590 = vmatprep.subr.mxu0 0.0
    %591 = vmatpush1.msra.mxu0 0.0
    %592 = vmatprep.subr.mxu0 0.0
    %593 = vmatpush1.msra.mxu0 0.0
    %594 = vmatprep.subr.mxu0 0.0
    %595 = vmatpush1.msra.mxu0 0.0
    %596 = vmatprep.subr.mxu0 0.0
    %597 = vmatpush1.msra.mxu0 0.0
    %598 = vmatprep.subr.mxu0 0.0
    %599 = vmatpush1.msra.mxu0 0.0
    %600 = vmatprep.subr.mxu0 0.0
    %601 = vmatpush1.msra.mxu0 0.0
    %602 = vmatprep.subr.mxu0 0.0
    %603 = vmatpush1.msra.mxu0 0.0
    %604 = vmatprep.subr.mxu0 0.0
    %605 = vmatpush1.msra.mxu0 0.0
    %606 = vmatprep.subr.mxu0 0.0
    %607 = vmatpush1.msra.mxu0 0.0
    %608 = vmatprep.subr.mxu0 0.0
    %609 = vmatpush1.msra.mxu0 0.0
    %610 = vmatprep.subr.mxu0 0.0
    %611 = vmatpush1.msra.mxu0 0.0
    %612 = vmatprep.subr.mxu0 0.0
    %613 = vmatpush1.msra.mxu0 0.0
    %614 = vmatprep.subr.mxu0 0.0
    %615 = vmatpush1.msra.mxu0 0.0
    %616 = vmatprep.subr.mxu0 0.0
    %617 = vmatpush1.msra.mxu0 0.0
    %618 = vmatprep.subr.mxu0 0.0
    %619 = vmatpush1.msra.mxu0 0.0
    %620 = vmatprep.subr.mxu0 0.0
    %621 = vmatpush1.msra.mxu0 0.0
    %622 = vmatprep.subr.mxu0 0.0
    %623 = vmatpush1.msra.mxu0 0.0
    %624 = vmatprep.subr.mxu0 0.0
    %625 = vmatpush1.msra.mxu0 0.0
    %626 = vmatprep.mubr.f32.mxu0 0.0
    %627 = vmatmul.mubr.f32.gmra.mrb[0].mxu0 %v560
    %v628 = vpop.f32.mrb[0].mxu0
    %v629 = vadd.f32 0.0, %v628
    %v630 = vpop.f32.mrb[0].mxu0
    %631 = vdwg.mxu0
    %v632 = vadd.f32 %v558, %v629
    %v633 = vtanh.pop %v632
    %634 = vst.msk [vmem:[#allocation3 + $0xc] sm:$0x3] %vm171, %v633
    %v635 = vld [vmem:[#allocation2 + $0xe] sm:$0x3]
    %v637 = vsel %vm95, %v633, 0
    %639 = vmatprep.subr.mxu0 0.0
    %640 = vmatpush1.msra.mxu0 %v89
    %641 = vmatprep.subr.mxu0 0.0
    %642 = vmatpush1.msra.mxu0 %v90
    %643 = vmatprep.subr.mxu0 0.0
    %644 = vmatpush1.msra.mxu0 %v91
    %645 = vmatprep.subr.mxu0 0.0
    %646 = vmatpush1.msra.mxu0 %v92
    %647 = vmatprep.subr.mxu0 0.0
    %648 = vmatpush1.msra.mxu0 0.0
    %649 = vmatprep.subr.mxu0 0.0
    %650 = vmatpush1.msra.mxu0 0.0
    %651 = vmatprep.subr.mxu0 0.0
    %652 = vmatpush1.msra.mxu0 0.0
    %653 = vmatprep.subr.mxu0 0.0
    %654 = vmatpush1.msra.mxu0 0.0
    %655 = vmatprep.subr.mxu0 0.0
    %656 = vmatpush1.msra.mxu0 0.0
    %657 = vmatprep.subr.mxu0 0.0
    %658 = vmatpush1.msra.mxu0 0.0
    %659 = vmatprep.subr.mxu0 0.0
    %660 = vmatpush1.msra.mxu0 0.0
    %661 = vmatprep.subr.mxu0 0.0
    %662 = vmatpush1.msra.mxu0 0.0
    %663 = vmatprep.subr.mxu0 0.0
    %664 = vmatpush1.msra.mxu0 0.0
    %665 = vmatprep.subr.mxu0 0.0
    %666 = vmatpush1.msra.mxu0 0.0
    %667 = vmatprep.subr.mxu0 0.0
    %668 = vmatpush1.msra.mxu0 0.0
    %669 = vmatprep.subr.mxu0 0.0
    %670 = vmatpush1.msra.mxu0 0.0
    %671 = vmatprep.subr.mxu0 0.0
    %672 = vmatpush1.msra.mxu0 0.0
    %673 = vmatprep.subr.mxu0 0.0
    %674 = vmatpush1.msra.mxu0 0.0
    %675 = vmatprep.subr.mxu0 0.0
    %676 = vmatpush1.msra.mxu0 0.0
    %677 = vmatprep.subr.mxu0 0.0
    %678 = vmatpush1.msra.mxu0 0.0
    %679 = vmatprep.subr.mxu0 0.0
    %680 = vmatpush1.msra.mxu0 0.0
    %681 = vmatprep.subr.mxu0 0.0
    %682 = vmatpush1.msra.mxu0 0.0
    %683 = vmatprep.subr.mxu0 0.0
    %684 = vmatpush1.msra.mxu0 0.0
    %685 = vmatprep.subr.mxu0 0.0
    %686 = vmatpush1.msra.mxu0 0.0
    %687 = vmatprep.subr.mxu0 0.0
    %688 = vmatpush1.msra.mxu0 0.0
    %689 = vmatprep.subr.mxu0 0.0
    %690 = vmatpush1.msra.mxu0 0.0
    %691 = vmatprep.subr.mxu0 0.0
    %692 = vmatpush1.msra.mxu0 0.0
    %693 = vmatprep.subr.mxu0 0.0
    %694 = vmatpush1.msra.mxu0 0.0
    %695 = vmatprep.subr.mxu0 0.0
    %696 = vmatpush1.msra.mxu0 0.0
    %697 = vmatprep.subr.mxu0 0.0
    %698 = vmatpush1.msra.mxu0 0.0
    %699 = vmatprep.subr.mxu0 0.0
    %700 = vmatpush1.msra.mxu0 0.0
    %701 = vmatprep.subr.mxu0 0.0
    %702 = vmatpush1.msra.mxu0 0.0
    %703 = vmatprep.mubr.f32.mxu0 0.0
    %704 = vmatmul.mubr.f32.gmra.mrb[0].mxu0 %v637
    %v705 = vpop.f32.mrb[0].mxu0
    %v706 = vadd.f32 0.0, %v705
    %v707 = vpop.f32.mrb[0].mxu0
    %708 = vdwg.mxu0
    %v709 = vadd.f32 %v635, %v706
    %v710 = vtanh.pop %v709
    %711 = vst.msk [vmem:[#allocation3 + $0xe] sm:$0x3] %vm171, %v710
    %712 = vst.msk [vmem:[%s5] sm:$0x3] %vm171, %v710
    %v713 = vld [vmem:[%s2] sm:$0xff]
    %v714 = vld [vmem:[%s2 + $0x8] sm:$0xff]
    %v715 = vld [vmem:[%s2 + $0x10] sm:$0xff]
    %v716 = vld [vmem:[%s2 + $0x18] sm:$0xff]
    %v717 = vld [vmem:[%s2 + $0x20] sm:$0x1]
    %v718 = vld [vmem:[#allocation3] sm:$0xff]
    %v719 = vld [vmem:[#allocation3 + $0x8] sm:$0xff]
    %v720 = vlaneseq
    %v721 = vshrl.u32 %v720, 7
    %v722 = vsub.s32 0, %v721
    %v723 = vrot.slane %v717, %v722
    %v725 = vsel %vm95, %v718, 0
    %v728 = vsel %vm95, %v719, 0
    %730 = vmatprep.subr.mxu0 0.0
    %731 = vmatpush1.msra.mxu0 %v713
    %732 = vmatprep.subr.mxu0 0.0
    %733 = vmatpush1.msra.mxu0 %v714
    %734 = vmatprep.subr.mxu0 0.0
    %735 = vmatpush1.msra.mxu0 %v715
    %736 = vmatprep.subr.mxu0 0.0
    %737 = vmatpush1.msra.mxu0 %v716
    %738 = vmatprep.subr.mxu0 0.0
    %739 = vmatpush1.msra.mxu0 0.0
    %740 = vmatprep.subr.mxu0 0.0
    %741 = vmatpush1.msra.mxu0 0.0
    %742 = vmatprep.subr.mxu0 0.0
    %743 = vmatpush1.msra.mxu0 0.0
    %744 = vmatprep.subr.mxu0 0.0
    %745 = vmatpush1.msra.mxu0 0.0
    %746 = vmatprep.subr.mxu0 0.0
    %747 = vmatpush1.msra.mxu0 0.0
    %748 = vmatprep.subr.mxu0 0.0
    %749 = vmatpush1.msra.mxu0 0.0
    %750 = vmatprep.subr.mxu0 0.0
    %751 = vmatpush1.msra.mxu0 0.0
    %752 = vmatprep.subr.mxu0 0.0
    %753 = vmatpush1.msra.mxu0 0.0
    %754 = vmatprep.subr.mxu0 0.0
    %755 = vmatpush1.msra.mxu0 0.0
    %756 = vmatprep.subr.mxu0 0.0
    %757 = vmatpush1.msra.mxu0 0.0
    %758 = vmatprep.subr.mxu0 0.0
    %759 = vmatpush1.msra.mxu0 0.0
    %760 = vmatprep.subr.mxu0 0.0
    %761 = vmatpush1.msra.mxu0 0.0
    %762 = vmatprep.subr.mxu0 0.0
    %763 = vmatpush1.msra.mxu0 0.0
    %764 = vmatprep.subr.mxu0 0.0
    %765 = vmatpush1.msra.mxu0 0.0
    %766 = vmatprep.subr.mxu0 0.0
    %767 = vmatpush1.msra.mxu0 0.0
    %768 = vmatprep.subr.mxu0 0.0
    %769 = vmatpush1.msra.mxu0 0.0
    %770 = vmatprep.subr.mxu0 0.0
    %771 = vmatpush1.msra.mxu0 0.0
    %772 = vmatprep.subr.mxu0 0.0
    %773 = vmatpush1.msra.mxu0 0.0
    %774 = vmatprep.subr.mxu0 0.0
    %775 = vmatpush1.msra.mxu0 0.0
    %776 = vmatprep.subr.mxu0 0.0
    %777 = vmatpush1.msra.mxu0 0.0
    %778 = vmatprep.subr.mxu0 0.0
    %779 = vmatpush1.msra.mxu0 0.0
    %780 = vmatprep.subr.mxu0 0.0
    %781 = vmatpush1.msra.mxu0 0.0
    %782 = vmatprep.subr.mxu0 0.0
    %783 = vmatpush1.msra.mxu0 0.0
    %784 = vmatprep.subr.mxu0 0.0
    %785 = vmatpush1.msra.mxu0 0.0
    %786 = vmatprep.subr.mxu0 0.0
    %787 = vmatpush1.msra.mxu0 0.0
    %788 = vmatprep.subr.mxu0 0.0
    %789 = vmatpush1.msra.mxu0 0.0
    %790 = vmatprep.subr.mxu0 0.0
    %791 = vmatpush1.msra.mxu0 0.0
    %792 = vmatprep.subr.mxu0 0.0
    %793 = vmatpush1.msra.mxu0 0.0
    %794 = vmatprep.mubr.f32.mxu0 0.0
    %795 = vmatmul.mubr.f32.gmra.mrb[0].mxu0 %v725
    %v796 = vpop.f32.mrb[0].mxu0
    %v797 = vadd.f32 %v723, %v796
    %v798 = vpop.f32.mrb[0].mxu0
    %799 = vmatprep.mubr.f32.mxu0 0.0
    %800 = vmatmul.mubr.f32.gmra.mrb[0].mxu0 %v728
    %v801 = vpop.f32.mrb[0].mxu0
    %v802 = vadd.f32 %v723, %v801
    %v803 = vpop.f32.mrb[0].mxu0
    %804 = vdwg.mxu0
    %805 = vst [vmem:[#allocation6] sm:$0xff] %v797
    %806 = vst [vmem:[#allocation6 + $0x8] sm:$0xff] %v802
    // Predicated region
    $region14: #{rnn_model_forward.1} parent=1 // pred_check
      _
    $region15: #{rnn_model_forward.1} parent=1 // pred_check_branch
      %808 = sbr.rel (0) target = $region17
    $region16: #{rnn_model_forward.1} parent=1 // pred_region
      %s810 = ssub.s32 256, 256
      %811 = vsyncadd [#allocation7], %s810
      %s812 = sshll.u32 [#allocation6], 4
      %s813 = int_to_ptr.vmem [resolvable:$true] %s812
      %818 = dma.vmem_to_hbm [thread:$0]  %s813, 256, %s4, [#allocation7], 128, 128, 8
    $region17: #{rnn_model_forward.1} parent=1 // pred_fallthru
      _
    // Predicated region
    $region18: #{rnn_model_forward.1} parent=1 // pred_check
      _
    $region19: #{rnn_model_forward.1} parent=1 // pred_check_branch
      %820 = sbr.rel (0) target = $region21
    $region20: #{rnn_model_forward.1} parent=1 // pred_region
      _
    $region21: #{rnn_model_forward.1} parent=1 // pred_fallthru
      _
    // Predicated region
    $region22: #{rnn_model_forward.1} parent=1 // pred_check
      _
    $region23: #{rnn_model_forward.1} parent=1 // pred_check_branch
      %822 = sbr.rel (0) target = $region25
    $region24: #{rnn_model_forward.1} parent=1 // pred_region
      %823 = dma.done [#allocation7], 256
    $region25: #{rnn_model_forward.1} parent=1 // pred_fallthru
      _
    // Predicated region
    $region26: #{rnn_model_forward.1} parent=1 // pred_check
      _
    $region27: #{rnn_model_forward.1} parent=1 // pred_check_branch
      %825 = sbr.rel (0) target = $region29
    $region28: #{rnn_model_forward.1} parent=1 // pred_region
      _
    $region29: #{rnn_model_forward.1} parent=1 // pred_fallthru
      _
    %826 = vsyncpa [#allocation7], 1

</llo_original>
